<compile_context>
chip_gen: v6e
topology: v6e:2x2x1
jax: 0.10.0
libtpu: 0.0.40
codegen_flags: <defaults>
</compile_context>

<pallas_src>
import functools

import jax
import jax.numpy as jnp
from jax.experimental import pallas as pl
from jax.experimental.pallas import tpu as pltpu


def _round_up(x, m):
    return ((x + m - 1) // m) * m


def qnet_kernel(state_ref, action_ref, w_in_ref, b_in_ref, wc_ref, bc_ref,
                wo_ref, bo_ref, out_ref, *, use_bf16_mxu):
    s = state_ref[...]                    # (TB, 3) f32
    a = action_ref[...]                   # (TB, 1) f32
    w_in = w_in_ref[...]                  # (4, 128) f32, block-diag [Ws;Wa]

    # ---- fused input layer: [state|action] @ W_in as 4 VPU broadcast-FMAs ----
    # K=4 is too small for the MXU; VALU slots are otherwise idle here.
    h = b_in_ref[...]                     # (1, 128) bias, broadcasts up
    h = h + s[:, 0:1] * w_in[0:1, :]
    h = h + s[:, 1:2] * w_in[1:2, :]
    h = h + s[:, 2:3] * w_in[2:3, :]
    h = h + a[:, 0:1] * w_in[3:4, :]
    h = jnp.maximum(h, 0.0)               # (TB, 128) == relu([h1|h2])

    # ---- common layer: K=128 contraction -> worth the MXU ----
    wc = wc_ref[...]                       # (128, 32)
    if use_bf16_mxu:
        # bf16 MXU inputs (v6e/v7x fast path), f32 accumulation.
        h_mm, wc_mm = h.astype(jnp.bfloat16), wc.astype(jnp.bfloat16)
    else:
        h_mm, wc_mm = h, wc
    h3 = jnp.dot(h_mm, wc_mm, preferred_element_type=jnp.float32) + bc_ref[...]
    h3 = jnp.maximum(h3, 0.0)              # (TB, 32), elementwise kept in f32

    # ---- output head: N=1 -> VPU multiply + lane reduction (skip MXU) ----
    q = jnp.sum(h3 * wo_ref[...], axis=-1, keepdims=True) + bo_ref[...]
    # NOTE: (TB,1) output means masked 1-of-128-lane stores; at 4 B/row this
    # is negligible traffic, so it is left as-is rather than transposed.
    out_ref[...] = q.astype(out_ref.dtype)


def qnet_forward(state, action, params, *, tb=1024, use_bf16_mxu=False):
    """state: (B,3) f32, action: (B,1) f32 -> (B,1) f32."""
    B = state.shape[0]
    state = state.astype(jnp.float32)
    action = action.astype(jnp.float32)

    ws, bs = params["ws"], params["bs"]            # (3,64), (64,)
    wa, ba = params["wa"], params["ba"]            # (1,64), (64,)
    wc, bc = params["wc"], params["bc"]            # (128,32), (32,)
    wo, bo = params["wo"], params["bo"]            # (32,1), (1,)

    # Block-diagonal fused input weight: [state|action] @ W_in == [h1|h2] pre-relu.
    w_in = jnp.zeros((4, 128), jnp.float32)
    w_in = w_in.at[:3, :64].set(ws).at[3:, 64:].set(wa)
    b_in = jnp.concatenate([bs, ba]).reshape(1, 128)
    bc2 = bc.reshape(1, 32)
    wo_row = wo.reshape(1, 32)                     # (32,1) -> row vector
    bo2 = bo.reshape(1, 1)

    # Batch tiling: largest tile up to `tb`, rows padded to a multiple of it.
    TB = min(tb, _round_up(B, 8))
    Bp = _round_up(B, TB)
    if Bp != B:
        state = jnp.pad(state, ((0, Bp - B), (0, 0)))
        action = jnp.pad(action, ((0, Bp - B), (0, 0)))
    grid = (Bp // TB,)

    kernel = functools.partial(qnet_kernel, use_bf16_mxu=use_bf16_mxu)

    out = pl.pallas_call(
        kernel,
        out_shape=jax.ShapeDtypeStruct((Bp, 1), jnp.float32),
        grid=grid,
        in_specs=[
            pl.BlockSpec((TB, 3), lambda i: (i, 0)),      # streamed state
            pl.BlockSpec((TB, 1), lambda i: (i, 0)),      # streamed action
            pl.BlockSpec((4, 128), lambda i: (0, 0)),     # weights stay resident
            pl.BlockSpec((1, 128), lambda i: (0, 0)),
            pl.BlockSpec((128, 32), lambda i: (0, 0)),
            pl.BlockSpec((1, 32), lambda i: (0, 0)),
            pl.BlockSpec((1, 32), lambda i: (0, 0)),
            pl.BlockSpec((1, 1), lambda i: (0, 0)),
        ],
        out_specs=pl.BlockSpec((TB, 1), lambda i: (i, 0)),
        compiler_params=pltpu.CompilerParams(
            dimension_semantics=("parallel",)),           # 2x on v7x megacore
    )(state, action, w_in, b_in, wc, bc2, wo_row, bo2)

    return out[:B]


def init_params(key):
    """PyTorch-default-style Linear init (uniform(+-1/sqrt(fan_in))).
    Weights stored as [in_features, out_features]."""
    def linear(k, fan_in, fan_out):
        kw, kb = jax.random.split(k)
        bound = 1.0 / jnp.sqrt(fan_in)
        w = jax.random.uniform(kw, (fan_in, fan_out), jnp.float32, -bound, bound)
        b = jax.random.uniform(kb, (fan_out,), jnp.float32, -bound, bound)
        return w, b

    k1, k2, k3, k4 = jax.random.split(key, 4)
    ws, bs = linear(k1, 3, 64)     # state_layer
    wa, ba = linear(k2, 1, 64)     # action_layer
    wc, bc = linear(k3, 128, 32)   # common_layer
    wo, bo = linear(k4, 32, 1)     # fc_out
    return dict(ws=ws, bs=bs, wa=wa, ba=ba, wc=wc, bc=bc, wo=wo, bo=bo)


def reference_forward(state, action, p):
    h1 = jax.nn.relu(state @ p["ws"] + p["bs"])
    h2 = jax.nn.relu(action @ p["wa"] + p["ba"])
    cat = jnp.concatenate([h1, h2], axis=1)
    h3 = jax.nn.relu(cat @ p["wc"] + p["bc"])
    return h3 @ p["wo"] + p["bo"]


if __name__ == "__main__":
    key = jax.random.PRNGKey(0)
    kp, ks, ka = jax.random.split(key, 3)
    params = init_params(kp)

    # Small smoke test (single grid step).
    B = 8
    state = jax.random.normal(ks, (B, 3), jnp.float32)     # e.g. pendulum obs
    action = jax.random.normal(ka, (B, 1), jnp.float32)
    q = jax.block_until_ready(qnet_forward(state, action, params))
    q_ref = reference_forward(state, action, params)
    assert q.shape == (B, 1)
    assert jnp.allclose(q, q_ref, atol=1e-5, rtol=1e-5), (q, q_ref)

    # Larger, non-multiple-of-8 batch: exercises padding + multi-step grid.
    B2 = 300
    ks2, ka2 = jax.random.split(jax.random.PRNGKey(1))
    state2 = jax.random.normal(ks2, (B2, 3), jnp.float32)
    action2 = jax.random.normal(ka2, (B2, 1), jnp.float32)
    q2 = jax.block_until_ready(qnet_forward(state2, action2, params, tb=128))
    q2_ref = reference_forward(state2, action2, params)
    assert q2.shape == (B2, 1)
    assert jnp.allclose(q2, q2_ref, atol=1e-5, rtol=1e-5)

    print("KERNEL_OK")
</pallas_src>

<mosaic_0001>
module attributes {stable_mosaic.version = 11 : i64} {
  func.func @qnet_kernel(%arg0: i32, %arg1: memref<8x3xf32, #tpu.memory_space<vmem>>, %arg2: memref<8x1xf32, #tpu.memory_space<vmem>>, %arg3: memref<4x128xf32, #tpu.memory_space<vmem>>, %arg4: memref<1x128xf32, #tpu.memory_space<vmem>>, %arg5: memref<128x32xf32, #tpu.memory_space<vmem>>, %arg6: memref<1x32xf32, #tpu.memory_space<vmem>>, %arg7: memref<1x32xf32, #tpu.memory_space<vmem>>, %arg8: memref<1x1xf32, #tpu.memory_space<vmem>>, %arg9: memref<8x1xf32, #tpu.memory_space<vmem>>) attributes {dimension_semantics = [#tpu.dimension_semantics<parallel>], iteration_bounds = array<i64: 1>, scalar_prefetch = 0 : i64, scratch_operands = 0 : i64, tpu.core_type = #tpu.core_type<tc>, window_params = [{transform_indices = @transform_0, window_bounds = array<i64: 8, 3>}, {transform_indices = @transform_1, window_bounds = array<i64: 8, 1>}, {pipeline_mode = #tpu.pipeline_mode<synchronous>, transform_indices = @transform_2, window_bounds = array<i64: 4, 128>}, {pipeline_mode = #tpu.pipeline_mode<synchronous>, transform_indices = @transform_3, window_bounds = array<i64: 1, 128>}, {pipeline_mode = #tpu.pipeline_mode<synchronous>, transform_indices = @transform_4, window_bounds = array<i64: 128, 32>}, {pipeline_mode = #tpu.pipeline_mode<synchronous>, transform_indices = @transform_5, window_bounds = array<i64: 1, 32>}, {pipeline_mode = #tpu.pipeline_mode<synchronous>, transform_indices = @transform_6, window_bounds = array<i64: 1, 32>}, {pipeline_mode = #tpu.pipeline_mode<synchronous>, transform_indices = @transform_7, window_bounds = array<i64: 1, 1>}, {transform_indices = @transform_8, window_bounds = array<i64: 8, 1>}]} {
    %c0 = arith.constant 0 : index
    %c0_0 = arith.constant 0 : index
    %0 = vector.load %arg1[%c0, %c0_0] : memref<8x3xf32, #tpu.memory_space<vmem>>, vector<8x3xf32>
    %c0_1 = arith.constant 0 : index
    %c0_2 = arith.constant 0 : index
    %1 = vector.load %arg2[%c0_1, %c0_2] : memref<8x1xf32, #tpu.memory_space<vmem>>, vector<8x1xf32>
    %c0_3 = arith.constant 0 : index
    %c0_4 = arith.constant 0 : index
    %2 = vector.load %arg3[%c0_3, %c0_4] : memref<4x128xf32, #tpu.memory_space<vmem>>, vector<4x128xf32>
    %c0_5 = arith.constant 0 : index
    %c0_6 = arith.constant 0 : index
    %3 = vector.load %arg4[%c0_5, %c0_6] : memref<1x128xf32, #tpu.memory_space<vmem>>, vector<1x128xf32>
    %4 = vector.extract_strided_slice %0 {offsets = [0, 0], sizes = [8, 1], strides = [1, 1]} : vector<8x3xf32> to vector<8x1xf32>
    %5 = vector.extract_strided_slice %2 {offsets = [0, 0], sizes = [1, 128], strides = [1, 1]} : vector<4x128xf32> to vector<1x128xf32>
    %6 = vector.broadcast %4 : vector<8x1xf32> to vector<8x128xf32>
    %7 = vector.broadcast %5 : vector<1x128xf32> to vector<8x128xf32>
    %8 = arith.mulf %6, %7 : vector<8x128xf32>
    %9 = vector.broadcast %3 : vector<1x128xf32> to vector<8x128xf32>
    %10 = arith.addf %9, %8 : vector<8x128xf32>
    %11 = vector.extract_strided_slice %0 {offsets = [0, 1], sizes = [8, 1], strides = [1, 1]} : vector<8x3xf32> to vector<8x1xf32>
    %12 = vector.extract_strided_slice %2 {offsets = [1, 0], sizes = [1, 128], strides = [1, 1]} : vector<4x128xf32> to vector<1x128xf32>
    %13 = vector.broadcast %11 : vector<8x1xf32> to vector<8x128xf32>
    %14 = vector.broadcast %12 : vector<1x128xf32> to vector<8x128xf32>
    %15 = arith.mulf %13, %14 : vector<8x128xf32>
    %16 = arith.addf %10, %15 : vector<8x128xf32>
    %17 = vector.extract_strided_slice %0 {offsets = [0, 2], sizes = [8, 1], strides = [1, 1]} : vector<8x3xf32> to vector<8x1xf32>
    %18 = vector.extract_strided_slice %2 {offsets = [2, 0], sizes = [1, 128], strides = [1, 1]} : vector<4x128xf32> to vector<1x128xf32>
    %19 = vector.broadcast %17 : vector<8x1xf32> to vector<8x128xf32>
    %20 = vector.broadcast %18 : vector<1x128xf32> to vector<8x128xf32>
    %21 = arith.mulf %19, %20 : vector<8x128xf32>
    %22 = arith.addf %16, %21 : vector<8x128xf32>
    %23 = vector.extract_strided_slice %2 {offsets = [3, 0], sizes = [1, 128], strides = [1, 1]} : vector<4x128xf32> to vector<1x128xf32>
    %24 = vector.broadcast %1 : vector<8x1xf32> to vector<8x128xf32>
    %25 = vector.broadcast %23 : vector<1x128xf32> to vector<8x128xf32>
    %26 = arith.mulf %24, %25 : vector<8x128xf32>
    %27 = arith.addf %22, %26 : vector<8x128xf32>
    %cst = arith.constant 0.000000e+00 : f32
    %28 = vector.broadcast %cst : f32 to vector<8x128xf32>
    %29 = arith.maximumf %27, %28 : vector<8x128xf32>
    %c0_7 = arith.constant 0 : index
    %c0_8 = arith.constant 0 : index
    %30 = vector.load %arg5[%c0_7, %c0_8] : memref<128x32xf32, #tpu.memory_space<vmem>>, vector<128x32xf32>
    %cst_9 = arith.constant dense<0.000000e+00> : vector<8x32xf32>
    %31 = tpu.matmul %29, %30, %cst_9 {dimension_numbers = #tpu.dot_dimension_numbers<[1], [0], [0], [1], [0, 0, 1, 1], [], []>} : vector<8x128xf32>, vector<128x32xf32>, vector<8x32xf32> -> vector<8x32xf32>
    %c0_10 = arith.constant 0 : index
    %c0_11 = arith.constant 0 : index
    %32 = vector.load %arg6[%c0_10, %c0_11] : memref<1x32xf32, #tpu.memory_space<vmem>>, vector<1x32xf32>
    %33 = vector.broadcast %32 : vector<1x32xf32> to vector<8x32xf32>
    %34 = arith.addf %31, %33 : vector<8x32xf32>
    %cst_12 = arith.constant 0.000000e+00 : f32
    %35 = vector.broadcast %cst_12 : f32 to vector<8x32xf32>
    %36 = arith.maximumf %34, %35 : vector<8x32xf32>
    %c0_13 = arith.constant 0 : index
    %c0_14 = arith.constant 0 : index
    %37 = vector.load %arg7[%c0_13, %c0_14] : memref<1x32xf32, #tpu.memory_space<vmem>>, vector<1x32xf32>
    %38 = vector.broadcast %37 : vector<1x32xf32> to vector<8x32xf32>
    %39 = arith.mulf %36, %38 : vector<8x32xf32>
    %cst_15 = arith.constant dense<0.000000e+00> : vector<8xf32>
    %40 = vector.multi_reduction <add>, %39, %cst_15 [1] : vector<8x32xf32> to vector<8xf32>
    %41 = vector.shape_cast %40 : vector<8xf32> to vector<8x1xf32>
    %c0_16 = arith.constant 0 : index
    %c0_17 = arith.constant 0 : index
    %42 = vector.load %arg8[%c0_16, %c0_17] : memref<1x1xf32, #tpu.memory_space<vmem>>, vector<1x1xf32>
    %43 = vector.broadcast %42 : vector<1x1xf32> to vector<8x1xf32>
    %44 = arith.addf %41, %43 : vector<8x1xf32>
    %c0_18 = arith.constant 0 : index
    %c0_19 = arith.constant 0 : index
    %45 = vector.load %arg9[%c0_18, %c0_19] : memref<8x1xf32, #tpu.memory_space<vmem>>, vector<8x1xf32>
    tpu.vector_store %arg9[%c0_18, %c0_19], %44 {strides = array<i32>} : memref<8x1xf32, #tpu.memory_space<vmem>>, vector<8x1xf32>,
    return
  }
  func.func @transform_0(%arg0: i32) -> (i32, i32) {
    %c0_i32 = arith.constant 0 : i32
    %c0_i32_0 = arith.constant 0 : i32
    return %arg0, %c0_i32 : i32, i32
  }
  func.func @transform_1(%arg0: i32) -> (i32, i32) {
    %c0_i32 = arith.constant 0 : i32
    %c0_i32_0 = arith.constant 0 : i32
    return %arg0, %c0_i32 : i32, i32
  }
  func.func @transform_2(%arg0: i32) -> (i32, i32) {
    %c0_i32 = arith.constant 0 : i32
    %c0_i32_0 = arith.constant 0 : i32
    %c0_i32_1 = arith.constant 0 : i32
    return %c0_i32, %c0_i32_0 : i32, i32
  }
  func.func @transform_3(%arg0: i32) -> (i32, i32) {
    %c0_i32 = arith.constant 0 : i32
    %c0_i32_0 = arith.constant 0 : i32
    %c0_i32_1 = arith.constant 0 : i32
    return %c0_i32, %c0_i32_0 : i32, i32
  }
  func.func @transform_4(%arg0: i32) -> (i32, i32) {
    %c0_i32 = arith.constant 0 : i32
    %c0_i32_0 = arith.constant 0 : i32
    %c0_i32_1 = arith.constant 0 : i32
    return %c0_i32, %c0_i32_0 : i32, i32
  }
  func.func @transform_5(%arg0: i32) -> (i32, i32) {
    %c0_i32 = arith.constant 0 : i32
    %c0_i32_0 = arith.constant 0 : i32
    %c0_i32_1 = arith.constant 0 : i32
    return %c0_i32, %c0_i32_0 : i32, i32
  }
  func.func @transform_6(%arg0: i32) -> (i32, i32) {
    %c0_i32 = arith.constant 0 : i32
    %c0_i32_0 = arith.constant 0 : i32
    %c0_i32_1 = arith.constant 0 : i32
    return %c0_i32, %c0_i32_0 : i32, i32
  }
  func.func @transform_7(%arg0: i32) -> (i32, i32) {
    %c0_i32 = arith.constant 0 : i32
    %c0_i32_0 = arith.constant 0 : i32
    %c0_i32_1 = arith.constant 0 : i32
    return %c0_i32, %c0_i32_0 : i32, i32
  }
  func.func @transform_8(%arg0: i32) -> (i32, i32) {
    %c0_i32 = arith.constant 0 : i32
    %c0_i32_0 = arith.constant 0 : i32
    return %arg0, %c0_i32 : i32, i32
  }
}

</mosaic_0001>

<llo_original>
// kernel: tpu_custom_call.1
$region0: #{tpu_custom_call.1}
  #allocation0 [shape = 'u32[]', space=smem, size = 0x4, offset = 0x4, fixed_abs, tag = 'smem constant byte address 0x4 - core index']
  #allocation1 [shape = 'u32[144,128]{1,0:T(1,128)}', space=vmem, size = 0x12000, scoped, tag = 'internal scratch']
  #allocation2 [shape = 'f32[1,1]{1,0:T(1,128)S(1)}', space=vmem, size = 0x200, scoped, tag = 'scoped memory for tpu_custom_call.1']
  %s0 = inlined_call_operand.vmem [shape: f32[8,3], index: 0, kind: input, shape index: {}]
  %s1 = inlined_call_operand.vmem [shape: f32[8,1], index: 1, kind: input, shape index: {}]
  %s2 = inlined_call_operand.vmem [shape: f32[4,128], index: 2, kind: input, shape index: {}]
  %s3 = inlined_call_operand.vmem [shape: f32[1,128], index: 3, kind: input, shape index: {}]
  %s4 = inlined_call_operand.vmem [shape: f32[128,32], index: 4, kind: input, shape index: {}]
  %s5 = inlined_call_operand.vmem [shape: f32[1,32], index: 5, kind: input, shape index: {}]
  %s6 = inlined_call_operand.vmem [shape: f32[1,32], index: 6, kind: input, shape index: {}]
  %s7 = inlined_call_operand.<no memory space> [shape: f32[1,1], index: 7, kind: input, shape index: {}]
  %s8 = inlined_call_operand.vmem [shape: f32[8,1], index: 8, kind: output, shape index: {}]
  %s9 = sld [smem:[#allocation0]]
  $region42: #{tpu_custom_call.1} parent=0
    _
  %s11 = ssub.s32 1, %s9
  %s12 = scalar_select 0, %s11, %s9
  %v13 = vstv %s7
  %14 = vst [vmem:[#allocation2] sm:$0x1] %v13
  // Predicated region
  $region2: #{tpu_custom_call.1} parent=0 // pred_check
    _
  $region3: #{tpu_custom_call.1} parent=0 // pred_check_branch
    %16 = sbr.rel (0) target = $region5
  $region4: #{tpu_custom_call.1} parent=0 // pred_region
    _
  $region5: #{tpu_custom_call.1} parent=0 // pred_fallthru
    _
  // Predicated region
  $region6: #{tpu_custom_call.1} parent=0 // pred_check
    _
  $region7: #{tpu_custom_call.1} parent=0 // pred_check_branch
    %18 = sbr.rel (0) target = $region9
  $region8: #{tpu_custom_call.1} parent=0 // pred_region
    _
  $region9: #{tpu_custom_call.1} parent=0 // pred_fallthru
    _
  // Predicated region
  $region10: #{tpu_custom_call.1} parent=0 // pred_check
    _
  $region11: #{tpu_custom_call.1} parent=0 // pred_check_branch
    %20 = sbr.rel (0) target = $region13
  $region12: #{tpu_custom_call.1} parent=0 // pred_region
    _
  $region13: #{tpu_custom_call.1} parent=0 // pred_fallthru
    _
  // Predicated region
  $region14: #{tpu_custom_call.1} parent=0 // pred_check
    _
  $region15: #{tpu_custom_call.1} parent=0 // pred_check_branch
    %22 = sbr.rel (0) target = $region17
  $region16: #{tpu_custom_call.1} parent=0 // pred_region
    _
  $region17: #{tpu_custom_call.1} parent=0 // pred_fallthru
    _
  // Predicated region
  $region18: #{tpu_custom_call.1} parent=0 // pred_check
    _
  $region19: #{tpu_custom_call.1} parent=0 // pred_check_branch
    %24 = sbr.rel (0) target = $region21
  $region20: #{tpu_custom_call.1} parent=0 // pred_region
    _
  $region21: #{tpu_custom_call.1} parent=0 // pred_fallthru
    _
  // Predicated region
  $region22: #{tpu_custom_call.1} parent=0 // pred_check
    _
  $region23: #{tpu_custom_call.1} parent=0 // pred_check_branch
    %26 = sbr.rel (0) target = $region25
  $region24: #{tpu_custom_call.1} parent=0 // pred_region
    _
  $region25: #{tpu_custom_call.1} parent=0 // pred_fallthru
    _
  // Predicated region
  $region26: #{tpu_custom_call.1} parent=0 // pred_check
    _
  $region27: #{tpu_custom_call.1} parent=0 // pred_check_branch
    %28 = sbr.rel (0) target = $region29
  $region28: #{tpu_custom_call.1} parent=0 // pred_region
    _
  $region29: #{tpu_custom_call.1} parent=0 // pred_fallthru
    _
  // Predicated region
  $region30: #{tpu_custom_call.1} parent=0 // pred_check
    _
  $region31: #{tpu_custom_call.1} parent=0 // pred_check_branch
    %30 = sbr.rel (0) target = $region33
  $region32: #{tpu_custom_call.1} parent=0 // pred_region
    _
  $region33: #{tpu_custom_call.1} parent=0 // pred_fallthru
    _
  %v31 = vld [vmem:[%s0] sm:$0xff]
  %v32 = vld [vmem:[%s1] sm:$0xff]
  %v33 = vld [vmem:[%s2] sm:$0xf]
  %v34 = vld [vmem:[%s3] sm:$0x1]
  %36 = vset.pattern.permute.xlu0 0
  %37 = vperm.xlu0 %36, %v31
  %v38 = vpop.permute.xlu0 %37
  %v40 = vlaneseq
  %v41 = vshrl.u32 %v40, 7
  %v42 = vsub.s32 0, %v41
  %v43 = vrot.slane %v33, %v42
  %v44 = vmul.f32 %v38, %v43
  %v46 = vlaneseq
  %v47 = vshrl.u32 %v46, 7
  %v48 = vsub.s32 0, %v47
  %v49 = vrot.slane %v34, %v48
  %v51 = vadd.f32 %v49, %v44
  %52 = vset.pattern.permute.xlu0 1
  %53 = vperm.xlu0 %52, %v31
  %v54 = vpop.permute.xlu0 %53
  %v56 = vlaneseq
  %v57 = vshrl.u32 %v56, 7
  %v58 = vsub.s32 1, %v57
  %v59 = vrot.slane %v33, %v58
  %v60 = vmul.f32 %v54, %v59
  %v61 = vadd.f32 %v51, %v60
  %62 = vset.pattern.permute.xlu0 2
  %63 = vperm.xlu0 %62, %v31
  %v64 = vpop.permute.xlu0 %63
  %v66 = vlaneseq
  %v67 = vshrl.u32 %v66, 7
  %v68 = vsub.s32 2, %v67
  %v69 = vrot.slane %v33, %v68
  %v70 = vmul.f32 %v64, %v69
  %v71 = vadd.f32 %v61, %v70
  %73 = vset.pattern.permute.xlu0 0
  %74 = vperm.xlu0 %73, %v32
  %v75 = vpop.permute.xlu0 %74
  %v77 = vlaneseq
  %v78 = vshrl.u32 %v77, 7
  %v79 = vsub.s32 3, %v78
  %v80 = vrot.slane %v33, %v79
  %v81 = vmul.f32 %v75, %v80
  %v82 = vadd.f32 %v71, %v81
  %v83 = vmax.f32 %v82, 0.0
  %v84 = vld [vmem:[%s4] sm:$0xff]
  %v85 = vld [vmem:[%s4 + $0x8] sm:$0xff]
  %v86 = vld [vmem:[%s4 + $0x10] sm:$0xff]
  %v87 = vld [vmem:[%s4 + $0x18] sm:$0xff]
  %v88 = vld [vmem:[%s4 + $0x20] sm:$0xff]
  %v89 = vld [vmem:[%s4 + $0x28] sm:$0xff]
  %v90 = vld [vmem:[%s4 + $0x30] sm:$0xff]
  %v91 = vld [vmem:[%s4 + $0x38] sm:$0xff]
  %v92 = vld [vmem:[%s4 + $0x40] sm:$0xff]
  %v93 = vld [vmem:[%s4 + $0x48] sm:$0xff]
  %v94 = vld [vmem:[%s4 + $0x50] sm:$0xff]
  %v95 = vld [vmem:[%s4 + $0x58] sm:$0xff]
  %v96 = vld [vmem:[%s4 + $0x60] sm:$0xff]
  %v97 = vld [vmem:[%s4 + $0x68] sm:$0xff]
  %v98 = vld [vmem:[%s4 + $0x70] sm:$0xff]
  %v99 = vld [vmem:[%s4 + $0x78] sm:$0xff]
  %v100 = vld [vmem:[%s5] sm:$0x1]
  %v102 = vlaneseq
  %v103 = vshrl.u32 %v102, 7
  %v104 = vsub.s32 0, %v103
  %v105 = vrot.slane %v100, %v104
  %107 = vmatprep.subr.mxu0 0.0
  %108 = vmatpush1.msra.mxu0 %v99
  %109 = vmatprep.subr.mxu0 0.0
  %110 = vmatpush1.msra.mxu0 %v98
  %111 = vmatprep.subr.mxu0 0.0
  %112 = vmatpush1.msra.mxu0 %v97
  %113 = vmatprep.subr.mxu0 0.0
  %114 = vmatpush1.msra.mxu0 %v96
  %115 = vmatprep.subr.mxu0 0.0
  %116 = vmatpush1.msra.mxu0 %v95
  %117 = vmatprep.subr.mxu0 0.0
  %118 = vmatpush1.msra.mxu0 %v94
  %119 = vmatprep.subr.mxu0 0.0
  %120 = vmatpush1.msra.mxu0 %v93
  %121 = vmatprep.subr.mxu0 0.0
  %122 = vmatpush1.msra.mxu0 %v92
  %123 = vmatprep.subr.mxu0 0.0
  %124 = vmatpush1.msra.mxu0 %v91
  %125 = vmatprep.subr.mxu0 0.0
  %126 = vmatpush1.msra.mxu0 %v90
  %127 = vmatprep.subr.mxu0 0.0
  %128 = vmatpush1.msra.mxu0 %v89
  %129 = vmatprep.subr.mxu0 0.0
  %130 = vmatpush1.msra.mxu0 %v88
  %131 = vmatprep.subr.mxu0 0.0
  %132 = vmatpush1.msra.mxu0 %v87
  %133 = vmatprep.subr.mxu0 0.0
  %134 = vmatpush1.msra.mxu0 %v86
  %135 = vmatprep.subr.mxu0 0.0
  %136 = vmatpush1.msra.mxu0 %v85
  %137 = vmatprep.subr.mxu0 0.0
  %138 = vmatpush1.msra.mxu0 %v84
  %139 = vmatprep.subr.mxu0 0.0
  %140 = vmatpush2.msra.mxu0 0.0
  %141 = vmatprep.subr.mxu0 0.0
  %142 = vmatpush2.msra.mxu0 0.0
  %143 = vmatprep.subr.mxu0 0.0
  %144 = vmatpush2.msra.mxu0 0.0
  %145 = vmatprep.subr.mxu0 0.0
  %146 = vmatpush2.msra.mxu0 0.0
  %147 = vmatprep.subr.mxu0 0.0
  %148 = vmatpush2.msra.mxu0 0.0
  %149 = vmatprep.subr.mxu0 0.0
  %150 = vmatpush2.msra.mxu0 0.0
  %151 = vmatprep.subr.mxu0 0.0
  %152 = vmatpush2.msra.mxu0 0.0
  %153 = vmatprep.subr.mxu0 0.0
  %154 = vmatpush2.msra.mxu0 0.0
  %155 = vmatprep.subr.mxu0 0.0
  %156 = vmatpush2.msra.mxu0 0.0
  %157 = vmatprep.subr.mxu0 0.0
  %158 = vmatpush2.msra.mxu0 0.0
  %159 = vmatprep.subr.mxu0 0.0
  %160 = vmatpush2.msra.mxu0 0.0
  %161 = vmatprep.subr.mxu0 0.0
  %162 = vmatpush2.msra.mxu0 0.0
  %163 = vmatprep.subr.mxu0 0.0
  %164 = vmatpush2.msra.mxu0 0.0
  %165 = vmatprep.subr.mxu0 0.0
  %166 = vmatpush2.msra.mxu0 0.0
  %167 = vmatprep.subr.mxu0 0.0
  %168 = vmatpush2.msra.mxu0 0.0
  %169 = vmatprep.subr.mxu0 0.0
  %170 = vmatpush2.msra.mxu0 0.0
  %171 = vmatprep.mubr.f32.mxu0 0.0
  %172 = vmatmul.mubr.f32.gmra.mxu0 %v83
  %v173 = vpop.f32.mrf.mxu0
  %v174 = vadd.f32 %v105, %v173
  %v175 = vpop.f32.mrf.mxu0
  %176 = vdwg.mxu0
  %v177 = vmax.f32 %v174, 0.0
  %v178 = vld [vmem:[%s6] sm:$0x1]
  %v180 = vlaneseq
  %v181 = vshrl.u32 %v180, 7
  %v182 = vsub.s32 0, %v181
  %v183 = vrot.slane %v178, %v182
  %v185 = vmul.f32 %v177, %v183
  %vm186 = vcmask 261120
  %v187 = vsel %vm186, %v185, 0.0
  %188 = vadd.xlane.f32.xlu0 %v187
  %v189 = vpop.xlane.xlu0 %188
  %v190 = vld [vmem:[#allocation2] sm:$0x1]
  %v192 = vlaneseq
  %v193 = vshrl.u32 %v192, 7
  %v194 = vsub.s32 0, %v193
  %v195 = vrot.slane %v190, %v194
  %v197 = vadd.f32 %v189, %v195
  %vm198 = vcmask 7168
  %199 = vst.msk [vmem:[%s8] sm:$0xff] %vm198, %v197
  // Predicated region
  $region34: #{tpu_custom_call.1} parent=0 // pred_check
    _
  $region35: #{tpu_custom_call.1} parent=0 // pred_check_branch
    %201 = sbr.rel (0) target = $region37
  $region36: #{tpu_custom_call.1} parent=0 // pred_region
    _
  $region37: #{tpu_custom_call.1} parent=0 // pred_fallthru
    _
  // Predicated region
  $region38: #{tpu_custom_call.1} parent=0 // pred_check
    _
  $region39: #{tpu_custom_call.1} parent=0 // pred_check_branch
    %203 = sbr.rel (0) target = $region41
  $region40: #{tpu_custom_call.1} parent=0 // pred_region
    _
  $region41: #{tpu_custom_call.1} parent=0 // pred_fallthru
    _

</llo_original>
